<compile_context>
chip_gen: v6e
topology: v6e:2x2x1
jax: 0.10.0
libtpu: 0.0.40
codegen_flags: <defaults>
</compile_context>

<pallas_src>
import jax
import jax.numpy as jnp
from jax import lax
from jax.experimental import pallas as pl
from jax.experimental.pallas import tpu as pltpu

_LANES = 128
_CHUNK_ROWS = 256          # rows per inner fori_loop iteration (128 KiB f32 temps)


def _round_up(x, m):
    return ((x + m - 1) // m) * m


def _num_tensorcores():
    """Best-effort TensorCore count (2 on v7x, 1 on v5e/v6e); falls back to 1."""
    try:
        info = pltpu.get_tpu_info()
        for attr in ("num_cores", "core_count", "num_tensorcores",
                     "tensorcores_per_chip", "cores_per_chip"):
            v = getattr(info, attr, None)
            if v:
                return max(1, int(v))
    except Exception:
        pass
    return 1


def _make_kernel(rows, block_rows, chunk_rows, lanes, steps):
    """rows: true row count of the 2-D slab; steps: sequential grid extent."""
    n_chunks = block_rows // chunk_rows

    def kernel(pred_ref, tgt_ref, sum_out, cnt_out, sum_sc, cnt_sc):
        p = pl.program_id(0)                 # parallel slice (core split on v7x)
        i = pl.program_id(1)                 # sequential reduction axis

        @pl.when(i == 0)
        def _():
            sum_sc[...] = jnp.zeros_like(sum_sc)
            cnt_sc[...] = jnp.zeros_like(cnt_sc)

        # Logical (unclamped) block index; the DMA index_map clamps separately.
        blk = p * steps + i
        rows_before = blk * block_rows
        # Full block entirely inside the real array?  (Out-of-range clamped
        # blocks automatically fail this and go through the masked path.)
        is_full = (rows_before + block_rows) <= rows

        def accum_chunk(c, use_row_mask):
            r0 = pl.multiple_of(c * chunk_rows, chunk_rows)
            t = tgt_ref[pl.ds(r0, chunk_rows), :].astype(jnp.float32)
            pr = pred_ref[pl.ds(r0, chunk_rows), :].astype(jnp.float32)
            mask = t > 0.0
            if use_row_mask:
                # Only partial / out-of-range blocks pay for the iota mask.
                row_ids = lax.broadcasted_iota(jnp.int32, (chunk_rows, lanes), 0)
                rows_left = rows - rows_before - r0        # scalar-unit math
                mask = jnp.logical_and(row_ids < rows_left, mask)
            m = mask.astype(jnp.float32)
            d = t - pr
            sq = d * d * m                                  # one select-free mask mul
            # Partial-reduce down to one (8, lanes) vreg tile (pure VPU adds).
            sum_sc[...] += jnp.sum(sq.reshape(-1, 8, lanes), axis=0)
            cnt_sc[...] += jnp.sum(m.reshape(-1, 8, lanes), axis=0)

        def run(use_row_mask):
            if n_chunks == 1:
                accum_chunk(0, use_row_mask)
            else:
                def body(c, carry):
                    accum_chunk(c, use_row_mask)
                    return carry
                lax.fori_loop(0, n_chunks, body, 0, unroll=min(4, n_chunks))

        @pl.when(is_full)
        def _():
            run(use_row_mask=False)

        @pl.when(jnp.logical_not(is_full))
        def _():
            run(use_row_mask=True)

        @pl.when(i == pl.num_programs(1) - 1)
        def _():
            sum_out[...] = sum_sc[...].reshape(1, 8, lanes)
            cnt_out[...] = cnt_sc[...].reshape(1, 8, lanes)

    return kernel


def _masked_sums_2d(pred2d, tgt2d, *, block_rows, num_parts):
    """Returns (sum of masked squared diffs, count of valid elems) as f32 scalars."""
    rows, lanes = pred2d.shape

    rows8 = _round_up(rows, 8)
    if rows8 <= _CHUNK_ROWS:
        block_rows_eff = rows8
        chunk_rows = rows8
    else:
        br = _round_up(block_rows, _CHUNK_ROWS)
        block_rows_eff = min(br, _round_up(rows8, _CHUNK_ROWS))
        chunk_rows = _CHUNK_ROWS

    num_blocks = pl.cdiv(rows, block_rows_eff)
    steps = pl.cdiv(num_blocks, num_parts)

    def in_map(p, i):
        blk = p * steps + i
        # Clamp so the DMA never starts past the array; fully out-of-range
        # logical blocks contribute zero inside the kernel.
        return (jnp.minimum(blk, num_blocks - 1), 0)

    def out_map(p, i):
        return (p, 0, 0)

    kernel = _make_kernel(rows, block_rows_eff, chunk_rows, lanes, steps)

    # Only raise the scoped-VMEM limit if the double-buffered working set needs it.
    itemsize = jnp.dtype(pred2d.dtype).itemsize
    working = 2 * 2 * block_rows_eff * lanes * itemsize     # 2 inputs x 2 buffers
    cp_kwargs = dict(dimension_semantics=("parallel", "arbitrary"))
    if working > (12 << 20):
        cp_kwargs["vmem_limit_bytes"] = int(min(working + (16 << 20), 96 << 20))

    sums, cnts = pl.pallas_call(
        kernel,
        out_shape=(
            jax.ShapeDtypeStruct((num_parts, 8, lanes), jnp.float32),
            jax.ShapeDtypeStruct((num_parts, 8, lanes), jnp.float32),
        ),
        grid_spec=pltpu.PrefetchScalarGridSpec(
            num_scalar_prefetch=0,
            grid=(num_parts, steps),
            in_specs=[
                pl.BlockSpec((block_rows_eff, lanes), in_map),
                pl.BlockSpec((block_rows_eff, lanes), in_map),
            ],
            out_specs=[
                pl.BlockSpec((1, 8, lanes), out_map),
                pl.BlockSpec((1, 8, lanes), out_map),
            ],
            scratch_shapes=[
                pltpu.VMEM((8, lanes), jnp.float32),   # running squared-diff sum
                pltpu.VMEM((8, lanes), jnp.float32),   # running valid count
            ],
        ),
        compiler_params=pltpu.CompilerParams(**cp_kwargs),
    )(pred2d, tgt2d)

    return jnp.sum(sums), jnp.sum(cnts)


def masked_mse_loss(pred, target, *, block_rows=4096, num_parts=None):
    """mean((target - pred)**2 over target > 0), computed with a Pallas TPU kernel."""
    assert pred.shape == target.shape, "inconsistent dimensions"
    n = pred.size
    lanes = _LANES

    if num_parts is None:
        num_parts = _num_tensorcores()
    # TODO(synk): on v7x, confirm in a trace that the leading "parallel" axis
    # actually shards across both TensorCores; if not, switch axis 0 to
    # pltpu.CORE_PARALLEL (or pl.core_map over pltpu.create_tensorcore_mesh).

    flat_p = pred.reshape(-1)                 # free (contiguous, no copy)
    flat_t = target.reshape(-1)
    n_main = (n // lanes) * lanes             # lane-aligned prefix handled in-kernel

    total_sum = jnp.float32(0.0)
    total_cnt = jnp.float32(0.0)

    if n_main:
        if n_main == n:
            p_main, t_main = flat_p, flat_t   # pure reshape, zero copies
        else:
            # TODO(synk): the prefix slice still copies the main part when
            # numel % 128 != 0; a fully zero-copy ragged tail needs a 1-D BlockSpec.
            p_main, t_main = flat_p[:n_main], flat_t[:n_main]
        s, c = _masked_sums_2d(
            p_main.reshape(-1, lanes), t_main.reshape(-1, lanes),
            block_rows=block_rows, num_parts=num_parts)
        total_sum = total_sum + s
        total_cnt = total_cnt + c

    if n_main != n:
        # <128-element tail: tiny wrapper-side masked sum (no pad, no remat).
        tp = flat_p[n_main:].astype(jnp.float32)
        tt = flat_t[n_main:].astype(jnp.float32)
        tm = (tt > 0.0).astype(jnp.float32)
        d = tt - tp
        total_sum = total_sum + jnp.sum(d * d * tm)
        total_cnt = total_cnt + jnp.sum(tm)

    # Matches torch: NaN if there are no valid elements.
    return total_sum / total_cnt


def _reference(pred, target):
    mask = target > 0
    diff = target - pred
    return jnp.sum(jnp.where(mask, diff * diff, 0.0)) / jnp.sum(mask)


if __name__ == "__main__":
    key = jax.random.PRNGKey(0)
    k1, k2 = jax.random.split(key)

    # Small NCHW-like shapes: batch=2, channels=4, spatial=16x16.
    shape = (2, 4, 16, 16)
    pred = jax.random.normal(k1, shape, dtype=jnp.float32)
    # target: mix of positive values and non-positive (masked-out) entries.
    target = jax.random.normal(k2, shape, dtype=jnp.float32)

    loss = masked_mse_loss(pred, target)
    loss = jax.block_until_ready(loss)

    ref = jax.block_until_ready(_reference(pred, target))
    assert jnp.allclose(loss, ref, rtol=1e-5, atol=1e-5), (loss, ref)

    print("KERNEL_OK")
</pallas_src>

<mosaic_0001>
module attributes {stable_mosaic.version = 11 : i64} {
  func.func @kernel(%arg0: i32, %arg1: i32, %arg2: memref<16x128xf32, #tpu.memory_space<vmem>>, %arg3: memref<16x128xf32, #tpu.memory_space<vmem>>, %arg4: memref<1x8x128xf32, #tpu.memory_space<vmem>>, %arg5: memref<1x8x128xf32, #tpu.memory_space<vmem>>, %arg6: memref<8x128xf32, #tpu.memory_space<vmem>>, %arg7: memref<8x128xf32, #tpu.memory_space<vmem>>) attributes {dimension_semantics = [#tpu.dimension_semantics<parallel>, #tpu.dimension_semantics<arbitrary>], iteration_bounds = array<i64: 1, 1>, scalar_prefetch = 0 : i64, scratch_operands = 2 : i64, tpu.core_type = #tpu.core_type<tc>, window_params = [{transform_indices = @transform_0, window_bounds = array<i64: 16, 128>}, {transform_indices = @transform_1, window_bounds = array<i64: 16, 128>}, {transform_indices = @transform_2, window_bounds = array<i64: 1, 8, 128>}, {transform_indices = @transform_3, window_bounds = array<i64: 1, 8, 128>}]} {
    %c0_i32 = arith.constant 0 : i32
    %0 = arith.cmpi eq, %arg1, %c0_i32 : i32
    %1 = arith.extui %0 : i1 to i32
    %c0_i32_0 = arith.constant 0 : i32
    %2 = arith.cmpi ne, %1, %c0_i32_0 : i32
    scf.if %2 {
      %cst = arith.constant 0.000000e+00 : f32
      %16 = vector.broadcast %cst : f32 to vector<8x128xf32>
      %c0 = arith.constant 0 : index
      %c0_7 = arith.constant 0 : index
      %17 = vector.load %arg6[%c0, %c0_7] : memref<8x128xf32, #tpu.memory_space<vmem>>, vector<8x128xf32>
      tpu.vector_store %arg6[%c0, %c0_7], %16 {strides = array<i32>} : memref<8x128xf32, #tpu.memory_space<vmem>>, vector<8x128xf32>,
      %cst_8 = arith.constant 0.000000e+00 : f32
      %18 = vector.broadcast %cst_8 : f32 to vector<8x128xf32>
      %c0_9 = arith.constant 0 : index
      %c0_10 = arith.constant 0 : index
      %19 = vector.load %arg7[%c0_9, %c0_10] : memref<8x128xf32, #tpu.memory_space<vmem>>, vector<8x128xf32>
      tpu.vector_store %arg7[%c0_9, %c0_10], %18 {strides = array<i32>} : memref<8x128xf32, #tpu.memory_space<vmem>>, vector<8x128xf32>,
    } else {
    }
    %c1_i32 = arith.constant 1 : i32
    %3 = arith.muli %arg0, %c1_i32 : i32
    %4 = arith.addi %3, %arg1 : i32
    %c16_i32 = arith.constant 16 : i32
    %5 = arith.muli %4, %c16_i32 : i32
    %c16_i32_1 = arith.constant 16 : i32
    %6 = arith.addi %5, %c16_i32_1 : i32
    %c16_i32_2 = arith.constant 16 : i32
    %7 = arith.cmpi sle, %6, %c16_i32_2 : i32
    %8 = arith.extui %7 : i1 to i32
    %c0_i32_3 = arith.constant 0 : i32
    %9 = arith.cmpi ne, %8, %c0_i32_3 : i32
    scf.if %9 {
      %c0_i32_7 = arith.constant 0 : i32
      %16 = tpu.assume_multiple %c0_i32_7, 16 : i32
      %17 = arith.index_cast %16 : i32 to index
      %c0 = arith.constant 0 : index
      %18 = vector.load %arg3[%17, %c0] : memref<16x128xf32, #tpu.memory_space<vmem>>, vector<16x128xf32>
      %19 = arith.index_cast %16 : i32 to index
      %c0_8 = arith.constant 0 : index
      %20 = vector.load %arg2[%19, %c0_8] : memref<16x128xf32, #tpu.memory_space<vmem>>, vector<16x128xf32>
      %cst = arith.constant 0.000000e+00 : f32
      %21 = vector.broadcast %cst : f32 to vector<16x128xf32>
      %22 = arith.cmpf ogt, %18, %21 : vector<16x128xf32>
      %23 = arith.extui %22 : vector<16x128xi1> to vector<16x128xi32>
      %24 = arith.sitofp %23 : vector<16x128xi32> to vector<16x128xf32>
      %25 = arith.subf %18, %20 : vector<16x128xf32>
      %26 = arith.mulf %25, %25 : vector<16x128xf32>
      %27 = arith.mulf %26, %24 : vector<16x128xf32>
      %c0_9 = arith.constant 0 : index
      %c0_10 = arith.constant 0 : index
      %28 = vector.load %arg6[%c0_9, %c0_10] : memref<8x128xf32, #tpu.memory_space<vmem>>, vector<8x128xf32>
      %29 = vector.shape_cast %27 : vector<16x128xf32> to vector<2x8x128xf32>
      %cst_11 = arith.constant dense<0.000000e+00> : vector<8x128xf32>
      %30 = vector.multi_reduction <add>, %29, %cst_11 [0] : vector<2x8x128xf32> to vector<8x128xf32>
      %31 = arith.addf %28, %30 : vector<8x128xf32>
      %c0_12 = arith.constant 0 : index
      %c0_13 = arith.constant 0 : index
      %32 = vector.load %arg6[%c0_12, %c0_13] : memref<8x128xf32, #tpu.memory_space<vmem>>, vector<8x128xf32>
      tpu.vector_store %arg6[%c0_12, %c0_13], %31 {strides = array<i32>} : memref<8x128xf32, #tpu.memory_space<vmem>>, vector<8x128xf32>,
      %c0_14 = arith.constant 0 : index
      %c0_15 = arith.constant 0 : index
      %33 = vector.load %arg7[%c0_14, %c0_15] : memref<8x128xf32, #tpu.memory_space<vmem>>, vector<8x128xf32>
      %34 = vector.shape_cast %24 : vector<16x128xf32> to vector<2x8x128xf32>
      %cst_16 = arith.constant dense<0.000000e+00> : vector<8x128xf32>
      %35 = vector.multi_reduction <add>, %34, %cst_16 [0] : vector<2x8x128xf32> to vector<8x128xf32>
      %36 = arith.addf %33, %35 : vector<8x128xf32>
      %c0_17 = arith.constant 0 : index
      %c0_18 = arith.constant 0 : index
      %37 = vector.load %arg7[%c0_17, %c0_18] : memref<8x128xf32, #tpu.memory_space<vmem>>, vector<8x128xf32>
      tpu.vector_store %arg7[%c0_17, %c0_18], %36 {strides = array<i32>} : memref<8x128xf32, #tpu.memory_space<vmem>>, vector<8x128xf32>,
    } else {
    }
    %true = arith.constant true
    %10 = arith.xori %7, %true : i1
    %11 = arith.extui %10 : i1 to i32
    %c0_i32_4 = arith.constant 0 : i32
    %12 = arith.cmpi ne, %11, %c0_i32_4 : i32
    scf.if %12 {
      %c0_i32_7 = arith.constant 0 : i32
      %16 = tpu.assume_multiple %c0_i32_7, 16 : i32
      %17 = arith.index_cast %16 : i32 to index
      %c0 = arith.constant 0 : index
      %18 = vector.load %arg3[%17, %c0] : memref<16x128xf32, #tpu.memory_space<vmem>>, vector<16x128xf32>
      %19 = arith.index_cast %16 : i32 to index
      %c0_8 = arith.constant 0 : index
      %20 = vector.load %arg2[%19, %c0_8] : memref<16x128xf32, #tpu.memory_space<vmem>>, vector<16x128xf32>
      %cst = arith.constant 0.000000e+00 : f32
      %21 = vector.broadcast %cst : f32 to vector<16x128xf32>
      %22 = arith.cmpf ogt, %18, %21 : vector<16x128xf32>
      %23 = tpu.iota {dimensions = array<i32: 0>} : vector<16x128xi32>
      %c16_i32_9 = arith.constant 16 : i32
      %24 = arith.subi %c16_i32_9, %5 : i32
      %25 = arith.subi %24, %16 : i32
      %26 = vector.broadcast %25 : i32 to vector<16x128xi32>
      %27 = arith.cmpi slt, %23, %26 : vector<16x128xi32>
      %28 = arith.andi %27, %22 : vector<16x128xi1>
      %29 = arith.extui %28 : vector<16x128xi1> to vector<16x128xi32>
      %30 = arith.sitofp %29 : vector<16x128xi32> to vector<16x128xf32>
      %31 = arith.subf %18, %20 : vector<16x128xf32>
      %32 = arith.mulf %31, %31 : vector<16x128xf32>
      %33 = arith.mulf %32, %30 : vector<16x128xf32>
      %c0_10 = arith.constant 0 : index
      %c0_11 = arith.constant 0 : index
      %34 = vector.load %arg6[%c0_10, %c0_11] : memref<8x128xf32, #tpu.memory_space<vmem>>, vector<8x128xf32>
      %35 = vector.shape_cast %33 : vector<16x128xf32> to vector<2x8x128xf32>
      %cst_12 = arith.constant dense<0.000000e+00> : vector<8x128xf32>
      %36 = vector.multi_reduction <add>, %35, %cst_12 [0] : vector<2x8x128xf32> to vector<8x128xf32>
      %37 = arith.addf %34, %36 : vector<8x128xf32>
      %c0_13 = arith.constant 0 : index
      %c0_14 = arith.constant 0 : index
      %38 = vector.load %arg6[%c0_13, %c0_14] : memref<8x128xf32, #tpu.memory_space<vmem>>, vector<8x128xf32>
      tpu.vector_store %arg6[%c0_13, %c0_14], %37 {strides = array<i32>} : memref<8x128xf32, #tpu.memory_space<vmem>>, vector<8x128xf32>,
      %c0_15 = arith.constant 0 : index
      %c0_16 = arith.constant 0 : index
      %39 = vector.load %arg7[%c0_15, %c0_16] : memref<8x128xf32, #tpu.memory_space<vmem>>, vector<8x128xf32>
      %40 = vector.shape_cast %30 : vector<16x128xf32> to vector<2x8x128xf32>
      %cst_17 = arith.constant dense<0.000000e+00> : vector<8x128xf32>
      %41 = vector.multi_reduction <add>, %40, %cst_17 [0] : vector<2x8x128xf32> to vector<8x128xf32>
      %42 = arith.addf %39, %41 : vector<8x128xf32>
      %c0_18 = arith.constant 0 : index
      %c0_19 = arith.constant 0 : index
      %43 = vector.load %arg7[%c0_18, %c0_19] : memref<8x128xf32, #tpu.memory_space<vmem>>, vector<8x128xf32>
      tpu.vector_store %arg7[%c0_18, %c0_19], %42 {strides = array<i32>} : memref<8x128xf32, #tpu.memory_space<vmem>>, vector<8x128xf32>,
    } else {
    }
    %c0_i32_5 = arith.constant 0 : i32
    %13 = arith.cmpi eq, %arg1, %c0_i32_5 : i32
    %14 = arith.extui %13 : i1 to i32
    %c0_i32_6 = arith.constant 0 : i32
    %15 = arith.cmpi ne, %14, %c0_i32_6 : i32
    scf.if %15 {
      %c0 = arith.constant 0 : index
      %c0_7 = arith.constant 0 : index
      %16 = vector.load %arg6[%c0, %c0_7] : memref<8x128xf32, #tpu.memory_space<vmem>>, vector<8x128xf32>
      %17 = vector.shape_cast %16 : vector<8x128xf32> to vector<1x8x128xf32>
      %c0_8 = arith.constant 0 : index
      %c0_9 = arith.constant 0 : index
      %c0_10 = arith.constant 0 : index
      %18 = vector.load %arg4[%c0_8, %c0_9, %c0_10] : memref<1x8x128xf32, #tpu.memory_space<vmem>>, vector<1x8x128xf32>
      tpu.vector_store %arg4[%c0_8, %c0_9, %c0_10], %17 {strides = array<i32>} : memref<1x8x128xf32, #tpu.memory_space<vmem>>, vector<1x8x128xf32>,
      %c0_11 = arith.constant 0 : index
      %c0_12 = arith.constant 0 : index
      %19 = vector.load %arg7[%c0_11, %c0_12] : memref<8x128xf32, #tpu.memory_space<vmem>>, vector<8x128xf32>
      %20 = vector.shape_cast %19 : vector<8x128xf32> to vector<1x8x128xf32>
      %c0_13 = arith.constant 0 : index
      %c0_14 = arith.constant 0 : index
      %c0_15 = arith.constant 0 : index
      %21 = vector.load %arg5[%c0_13, %c0_14, %c0_15] : memref<1x8x128xf32, #tpu.memory_space<vmem>>, vector<1x8x128xf32>
      tpu.vector_store %arg5[%c0_13, %c0_14, %c0_15], %20 {strides = array<i32>} : memref<1x8x128xf32, #tpu.memory_space<vmem>>, vector<1x8x128xf32>,
    } else {
    }
    return
  }
  func.func @transform_0(%arg0: i32, %arg1: i32) -> (i32, i32) {
    %c1_i32 = arith.constant 1 : i32
    %0 = arith.muli %arg0, %c1_i32 : i32
    %1 = arith.addi %0, %arg1 : i32
    %c0_i32 = arith.constant 0 : i32
    %2 = arith.minsi %1, %c0_i32 : i32
    %c0_i32_0 = arith.constant 0 : i32
    %c0_i32_1 = arith.constant 0 : i32
    return %2, %c0_i32_0 : i32, i32
  }
  func.func @transform_1(%arg0: i32, %arg1: i32) -> (i32, i32) {
    %c1_i32 = arith.constant 1 : i32
    %0 = arith.muli %arg0, %c1_i32 : i32
    %1 = arith.addi %0, %arg1 : i32
    %c0_i32 = arith.constant 0 : i32
    %2 = arith.minsi %1, %c0_i32 : i32
    %c0_i32_0 = arith.constant 0 : i32
    %c0_i32_1 = arith.constant 0 : i32
    return %2, %c0_i32_0 : i32, i32
  }
  func.func @transform_2(%arg0: i32, %arg1: i32) -> (i32, i32, i32) {
    %c0_i32 = arith.constant 0 : i32
    %c0_i32_0 = arith.constant 0 : i32
    %c0_i32_1 = arith.constant 0 : i32
    return %arg0, %c0_i32, %c0_i32_0 : i32, i32, i32
  }
  func.func @transform_3(%arg0: i32, %arg1: i32) -> (i32, i32, i32) {
    %c0_i32 = arith.constant 0 : i32
    %c0_i32_0 = arith.constant 0 : i32
    %c0_i32_1 = arith.constant 0 : i32
    return %arg0, %c0_i32, %c0_i32_0 : i32, i32, i32
  }
}

</mosaic_0001>

<llo_original>
// kernel: tpu_custom_call.1
$region0: #{tpu_custom_call.1}
  #allocation0 [shape = 'u32[]', space=smem, size = 0x4, offset = 0x4, fixed_abs, tag = 'smem constant byte address 0x4 - core index']
  #allocation1 [shape = 'u32[144,128]{1,0:T(1,128)}', space=vmem, size = 0x12000, scoped, tag = 'internal scratch']
  #allocation2 [shape = 'f32[8,128]{1,0:T(8,128)}', space=vmem, size = 0x1000, scoped, tag = 'scratch operand']
  #allocation3 [shape = 'f32[8,128]{1,0:T(8,128)}', space=vmem, size = 0x1000, scoped, tag = 'scratch operand']
  %s0 = inlined_call_operand.hbm [shape: f32[16,128], index: 0, kind: input, shape index: {}]
  %s1 = inlined_call_operand.hbm [shape: f32[16,128], index: 1, kind: input, shape index: {}]
  %s2 = inlined_call_operand.hbm [shape: f32[1,8,128], index: 2, kind: output, shape index: {0}]
  %s3 = inlined_call_operand.hbm [shape: f32[1,8,128], index: 3, kind: output, shape index: {1}]
  %4 = xla_tuple %s2, %s3
  %s5 = sld [smem:[#allocation0]]
  $region50: #{tpu_custom_call.1} parent=0
    _
  %s7 = ssub.s32 1, %s5
  %s8 = scalar_select 0, %s7, %s5
  $region1: #{tpu_custom_call.1} parent=0
    #allocation4 [shape = 'u8[8192]{0}', space=vmem, size = 0x2000, scoped, tag = 'input window, operand 0, single buffered']
    #allocation5 [shape = 's32[1]{0}', space=sflag, size = 0x4, scoped, tag = 'scoped memory for tpu_custom_call.1']
    #allocation6 [shape = 's32[1]{0}', space=sflag, size = 0x4, scoped, tag = 'scoped memory for tpu_custom_call.1']
    #allocation7 [shape = 'u8[8192]{0}', space=vmem, size = 0x2000, scoped, tag = 'input window, operand 1, single buffered']
    #allocation8 [shape = 's32[1]{0}', space=sflag, size = 0x4, scoped, tag = 'scoped memory for tpu_custom_call.1']
    #allocation9 [shape = 'u8[4096]{0}', space=vmem, size = 0x1000, scoped, tag = 'output window, operand 0, single buffered']
    #allocation10 [shape = 'u8[4096]{0}', space=vmem, size = 0x1000, scoped, tag = 'output window, operand 1, single buffered']
    #allocation11 [shape = 's32[1]{0}', space=sflag, size = 0x4, scoped, tag = 'scoped memory for tpu_custom_call.1']
    %9 = vsyncpa [#allocation5], 0
    %10 = vsyncpa [#allocation8], 0
    %11 = vsyncpa [#allocation6], 0
    %12 = vsyncpa [#allocation11], 0
    // Predicated region
    $region2: #{tpu_custom_call.1} parent=1 // pred_check
      _
    $region3: #{tpu_custom_call.1} parent=1 // pred_check_branch
      %14 = sbr.rel (0) target = $region5
    $region4: #{tpu_custom_call.1} parent=1 // pred_region
      %s15 = sadd.s32 0, 0
      %p16 = scmp.lt.s32.totalorder %s15, 0
      %s17 = scalar_select %p16, %s15, 0
      %s18 = smul.u32 2, %s17
      %s20 = ssub.s32 256, 256
      %21 = vsyncadd [#allocation5], %s20
      %s22 = smul.addr %s18, 128
      %s23 = scalar_lea.hbm %s0, %s22
      %s24 = sshll.u32 [#allocation4], 4
      %s25 = int_to_ptr.vmem [resolvable:$true] %s24
      %30 = dma.hbm_to_vmem [thread:$0]  %s23, 256, %s25, [#allocation5], 128, 128, 8
    $region5: #{tpu_custom_call.1} parent=1 // pred_fallthru
      _
    // Predicated region
    $region6: #{tpu_custom_call.1} parent=1 // pred_check
      _
    $region7: #{tpu_custom_call.1} parent=1 // pred_check_branch
      %32 = sbr.rel (0) target = $region9
    $region8: #{tpu_custom_call.1} parent=1 // pred_region
      %s33 = sadd.s32 0, 0
      %p34 = scmp.lt.s32.totalorder %s33, 0
      %s35 = scalar_select %p34, %s33, 0
      %s36 = smul.u32 2, %s35
      %s38 = ssub.s32 256, 256
      %39 = vsyncadd [#allocation8], %s38
      %s40 = smul.addr %s36, 128
      %s41 = scalar_lea.hbm %s1, %s40
      %s42 = sshll.u32 [#allocation7], 4
      %s43 = int_to_ptr.vmem [resolvable:$true] %s42
      %48 = dma.hbm_to_vmem [thread:$0]  %s41, 256, %s43, [#allocation8], 128, 128, 8
    $region9: #{tpu_custom_call.1} parent=1 // pred_fallthru
      _
    // Predicated region
    $region10: #{tpu_custom_call.1} parent=1 // pred_check
      _
    $region11: #{tpu_custom_call.1} parent=1 // pred_check_branch
      %50 = sbr.rel (0) target = $region13
    $region12: #{tpu_custom_call.1} parent=1 // pred_region
      %51 = dma.done [#allocation5], 256
    $region13: #{tpu_custom_call.1} parent=1 // pred_fallthru
      _
    // Predicated region
    $region14: #{tpu_custom_call.1} parent=1 // pred_check
      _
    $region15: #{tpu_custom_call.1} parent=1 // pred_check_branch
      %53 = sbr.rel (0) target = $region17
    $region16: #{tpu_custom_call.1} parent=1 // pred_region
      %54 = dma.done [#allocation8], 256
    $region17: #{tpu_custom_call.1} parent=1 // pred_fallthru
      _
    %s55 = sadd.s32 0, 0
    %p56 = scmp.lt.s32.totalorder %s55, 0
    %s57 = scalar_select %p56, %s55, 0
    %s58 = smul.u32 2, %s57
    %s59 = sadd.s32 0, 0
    %p60 = scmp.lt.s32.totalorder %s59, 0
    %s61 = scalar_select %p60, %s59, 0
    %s62 = smul.u32 2, %s61
    %p63 = scmp.eq.s32.totalorder 0, 0
    // Predicated region
    $region18: #{tpu_custom_call.1} parent=1 // pred_check
      %p64 = pneg %p63
    $region19: #{tpu_custom_call.1} parent=1 // pred_check_branch
      %66 = sbr.rel (%p64) target = $region21
    $region20: #{tpu_custom_call.1} parent=1 // pred_region
      %67 = vst [vmem:[#allocation2] sm:$0xff] 0.0
      %68 = vst [vmem:[#allocation3] sm:$0xff] 0.0
    $region21: #{tpu_custom_call.1} parent=1 // pred_fallthru
      _
    %s69 = sadd.s32 0, 0
    %s70 = smul.u32 %s69, 16
    %s71 = sadd.s32 %s70, 16
    %p72 = scmp.le.s32.totalorder %s71, 16
    // Predicated region
    $region22: #{tpu_custom_call.1} parent=1 // pred_check
      %p73 = pneg %p72
    $region23: #{tpu_custom_call.1} parent=1 // pred_check_branch
      %75 = sbr.rel (%p73) target = $region25
    $region24: #{tpu_custom_call.1} parent=1 // pred_region
      %v76 = vld [vmem:[#allocation7] sm:$0xff]
      %v77 = vld [vmem:[#allocation7 + $0x8] sm:$0xff]
      %v78 = vld [vmem:[#allocation4] sm:$0xff]
      %v79 = vld [vmem:[#allocation4 + $0x8] sm:$0xff]
      %vm80 = vcmp.gt.f32.partialorder %v76, 0.0
      %vm81 = vcmp.gt.f32.partialorder %v77, 0.0
      %v82 = vsel %vm80, 1, 0
      %v83 = vsel %vm81, 1, 0
      %v84 = vcvt.s32.f32 %v82
      %v85 = vcvt.s32.f32 %v83
      %v86 = vsub.f32 %v76, %v78
      %v87 = vsub.f32 %v77, %v79
      %v88 = vmul.f32 %v86, %v86
      %v89 = vmul.f32 %v87, %v87
      %v90 = vmul.f32 %v88, %v84
      %v91 = vmul.f32 %v89, %v85
      %v92 = vld [vmem:[#allocation2] sm:$0xff]
      %v93 = vadd.f32 %v90, %v91
      %v94 = vadd.f32 %v92, %v93
      %95 = vst [vmem:[#allocation2] sm:$0xff] %v94
      %v96 = vld [vmem:[#allocation3] sm:$0xff]
      %v97 = vadd.f32 %v84, %v85
      %v98 = vadd.f32 %v96, %v97
      %99 = vst [vmem:[#allocation3] sm:$0xff] %v98
    $region25: #{tpu_custom_call.1} parent=1 // pred_fallthru
      _
    %p100 = scmp.gt.s32.totalorder %s71, 16
    // Predicated region
    $region26: #{tpu_custom_call.1} parent=1 // pred_check
      %p101 = pneg %p100
    $region27: #{tpu_custom_call.1} parent=1 // pred_check_branch
      %103 = sbr.rel (%p101) target = $region29
    $region28: #{tpu_custom_call.1} parent=1 // pred_region
      %v104 = vld [vmem:[#allocation7] sm:$0xff]
      %v105 = vld [vmem:[#allocation7 + $0x8] sm:$0xff]
      %v106 = vld [vmem:[#allocation4] sm:$0xff]
      %v107 = vld [vmem:[#allocation4 + $0x8] sm:$0xff]
      %vm108 = vcmp.gt.f32.partialorder %v104, 0.0
      %vm109 = vcmp.gt.f32.partialorder %v105, 0.0
      %v110 = vlaneseq
      %v111 = vshrl.u32 %v110, 7
      %v112 = vadd.s32 %v111, 8
      %s113 = ssub.s32 16, %s70
      %s114 = ssub.s32 %s113, 0
      %v115 = vstv %s114
      %vm116 = vcmp.lt.s32.totalorder %v111, %v115
      %vm117 = vcmp.lt.s32.totalorder %v112, %v115
      %vm118 = vmand %vm116, %vm108
      %vm119 = vmand %vm117, %vm109
      %v120 = vsel %vm118, 1, 0
      %v121 = vsel %vm119, 1, 0
      %v122 = vcvt.s32.f32 %v120
      %v123 = vcvt.s32.f32 %v121
      %v124 = vsub.f32 %v104, %v106
      %v125 = vsub.f32 %v105, %v107
      %v126 = vmul.f32 %v124, %v124
      %v127 = vmul.f32 %v125, %v125
      %v128 = vmul.f32 %v126, %v122
      %v129 = vmul.f32 %v127, %v123
      %v130 = vld [vmem:[#allocation2] sm:$0xff]
      %v131 = vadd.f32 %v128, %v129
      %v132 = vadd.f32 %v130, %v131
      %133 = vst [vmem:[#allocation2] sm:$0xff] %v132
      %v134 = vld [vmem:[#allocation3] sm:$0xff]
      %v135 = vadd.f32 %v122, %v123
      %v136 = vadd.f32 %v134, %v135
      %137 = vst [vmem:[#allocation3] sm:$0xff] %v136
    $region29: #{tpu_custom_call.1} parent=1 // pred_fallthru
      _
    // Predicated region
    $region30: #{tpu_custom_call.1} parent=1 // pred_check
      %p138 = pneg %p63
    $region31: #{tpu_custom_call.1} parent=1 // pred_check_branch
      %140 = sbr.rel (%p138) target = $region33
    $region32: #{tpu_custom_call.1} parent=1 // pred_region
      %v141 = vld [vmem:[#allocation2] sm:$0xff]
      %142 = vst [vmem:[#allocation9] sm:$0xff] %v141
      %v143 = vld [vmem:[#allocation3] sm:$0xff]
      %144 = vst [vmem:[#allocation10] sm:$0xff] %v143
    $region33: #{tpu_custom_call.1} parent=1 // pred_fallthru
      _
    // Predicated region
    $region34: #{tpu_custom_call.1} parent=1 // pred_check
      _
    $region35: #{tpu_custom_call.1} parent=1 // pred_check_branch
      %146 = sbr.rel (0) target = $region37
    $region36: #{tpu_custom_call.1} parent=1 // pred_region
      %s148 = ssub.s32 128, 128
      %149 = vsyncadd [#allocation6], %s148
      %s151 = sshll.u32 [#allocation9], 4
      %s152 = int_to_ptr.vmem [resolvable:$true] %s151
      %154 = dma.vmem_to_hbm [thread:$0]  %s152, 128, %s2, [#allocation6]
    $region37: #{tpu_custom_call.1} parent=1 // pred_fallthru
      _
    // Predicated region
    $region38: #{tpu_custom_call.1} parent=1 // pred_check
      _
    $region39: #{tpu_custom_call.1} parent=1 // pred_check_branch
      %156 = sbr.rel (0) target = $region41
    $region40: #{tpu_custom_call.1} parent=1 // pred_region
      %s158 = ssub.s32 128, 128
      %159 = vsyncadd [#allocation11], %s158
      %s161 = sshll.u32 [#allocation10], 4
      %s162 = int_to_ptr.vmem [resolvable:$true] %s161
      %164 = dma.vmem_to_hbm [thread:$0]  %s162, 128, %s3, [#allocation11]
    $region41: #{tpu_custom_call.1} parent=1 // pred_fallthru
      _
    // Predicated region
    $region42: #{tpu_custom_call.1} parent=1 // pred_check
      _
    $region43: #{tpu_custom_call.1} parent=1 // pred_check_branch
      %166 = sbr.rel (0) target = $region45
    $region44: #{tpu_custom_call.1} parent=1 // pred_region
      %167 = dma.done [#allocation6], 128
    $region45: #{tpu_custom_call.1} parent=1 // pred_fallthru
      _
    // Predicated region
    $region46: #{tpu_custom_call.1} parent=1 // pred_check
      _
    $region47: #{tpu_custom_call.1} parent=1 // pred_check_branch
      %169 = sbr.rel (0) target = $region49
    $region48: #{tpu_custom_call.1} parent=1 // pred_region
      %170 = dma.done [#allocation11], 128
    $region49: #{tpu_custom_call.1} parent=1 // pred_fallthru
      _
    %171 = vsyncpa [#allocation5], 1
    %172 = vsyncpa [#allocation8], 1
    %173 = vsyncpa [#allocation6], 1
    %174 = vsyncpa [#allocation11], 1

</llo_original>
